<compile_context>
chip_gen: v5e
topology: v5e:2x2
jax: 0.10.0
libtpu: 0.0.40
codegen_flags: <defaults>
</compile_context>

<pallas_src>
import functools
import math

import jax
import jax.numpy as jnp
from jax.experimental import pallas as pl
from jax.experimental.pallas import tpu as pltpu

_LANE = 128


@functools.lru_cache(maxsize=None)
def _vmem_limit_bytes():
    """Per-generation VMEM limit: ~3/4 of physical, clamped to [32, 112] MiB."""
    try:
        cap = int(pltpu.get_tpu_info().vmem_capacity_bytes)
    except Exception:
        cap = 64 * 1024 * 1024                      # conservative (v7x) fallback
    return max(32 * 1024 * 1024, min(cap * 3 // 4, 112 * 1024 * 1024))


def _row_tile_target():
    # 512-row tiles on v5e/v6e (128 MiB VMEM), 256 on v7x (64 MiB VMEM).
    return 512 if _vmem_limit_bytes() >= 80 * 1024 * 1024 else 256


def _compiler_params(grid_rank=1):
    return pltpu.CompilerParams(
        dimension_semantics=("parallel",) * grid_rank,
        vmem_limit_bytes=_vmem_limit_bytes())


def _row_tiling(m):
    """Return (tile, padded_rows): tile is a multiple of 8, rows pad to tile."""
    target = _row_tile_target()
    if m <= target:
        tm = ((m + 7) // 8) * 8
    else:
        tm = target
    mp = ((m + tm - 1) // tm) * tm
    return tm, mp


def _pad_rows(x, mp):
    m = x.shape[0]
    if mp == m:
        return x
    return jnp.pad(x, ((0, mp - m),) + ((0, 0),) * (x.ndim - 1))


def _pad_lanes(n):
    return ((n + _LANE - 1) // _LANE) * _LANE


# ----------------------------------------------------------------------------
# Fused Pallas kernels
# ----------------------------------------------------------------------------
def _embed_stage_kernel(gene_ref, val_ref, pert_ref,
                        eg_ref, eb_ref,
                        cw1_ref, cb1_ref, cw2_ref, cb2_ref, cg_ref, cb_ref,
                        bng_ref, bnb_ref, bnm_ref, bnv_ref,
                        o_ref, *, max_value, ln_eps, bn_eps):
    # GeneEncoder: LayerNorm of gathered gene-embedding rows.
    g = gene_ref[...]
    mu = jnp.mean(g, axis=-1, keepdims=True)
    var = jnp.mean((g - mu) ** 2, axis=-1, keepdims=True)
    gene = (g - mu) * jax.lax.rsqrt(var + ln_eps) * eg_ref[...] + eb_ref[...]

    # ContinuousValueEncoder: clamp -> Linear(1,D)+ReLU -> Linear(D,D) -> LN.
    v = jnp.minimum(val_ref[...], max_value)                       # (tm, 1)
    h = jnp.maximum(v * cw1_ref[...] + cb1_ref[...], 0.0)           # (tm, D)
    y = jnp.dot(h.astype(jnp.bfloat16), cw2_ref[...],
                preferred_element_type=jnp.float32) + cb2_ref[...]
    mu = jnp.mean(y, axis=-1, keepdims=True)
    var = jnp.mean((y - mu) ** 2, axis=-1, keepdims=True)
    vals = (y - mu) * jax.lax.rsqrt(var + ln_eps) * cg_ref[...] + cb_ref[...]

    # total_embs = gene + values + pert, then BatchNorm1d (eval running stats).
    total = gene + vals + pert_ref[...]
    inv_std = jax.lax.rsqrt(bnv_ref[...] + bn_eps)
    o_ref[...] = ((total - bnm_ref[...]) * inv_std * bng_ref[...]
                  + bnb_ref[...]).astype(o_ref.dtype)               # bf16 out


def _encoder_layer_kernel(x_ref, bias_ref,
                          wqkv_ref, bqkv_ref, wo_ref, bo_ref,
                          ln1g_ref, ln1b_ref,
                          w1_ref, b1_ref, w2_ref, b2_ref,
                          ln2g_ref, ln2b_ref,
                          o_ref, *, nhead, scale, eps):
    # One batch row per grid step: x is (S, D) bf16; bias is (1, S) f32.
    x_bf = x_ref[...]
    S, D = x_bf.shape
    Dh = D // nhead
    x = x_bf.astype(jnp.float32)

    # --- self-attention block ------------------------------------------------
    qkv = jnp.dot(x_bf, wqkv_ref[...],
                  preferred_element_type=jnp.float32) + bqkv_ref[...]  # (S, 3D)
    # Fold softmax scale into q once (S*D mults, not nhead*S*S); cast to bf16
    # once here rather than per-head.
    q = (qkv[:, :D] * scale).astype(jnp.bfloat16)                      # (S, D)
    kv = qkv[:, D:].astype(jnp.bfloat16)                               # (S, 2D)
    bias = bias_ref[...]                                               # (1, S)

    # Accumulate each head's contribution straight into the output projection.
    proj = jnp.zeros((S, D), jnp.float32)
    for h in range(nhead):
        qh = q[:, h * Dh:(h + 1) * Dh]
        kh = kv[:, h * Dh:(h + 1) * Dh]
        vh = kv[:, D + h * Dh:D + (h + 1) * Dh]
        s = jax.lax.dot_general(qh, kh, (((1,), (1,)), ((), ())),
                                preferred_element_type=jnp.float32) + bias
        m = jnp.max(s, axis=-1, keepdims=True)
        p = jnp.exp(s - m)
        denom = jnp.sum(p, axis=-1, keepdims=True)
        oh = jnp.dot(p.astype(jnp.bfloat16), vh,
                     preferred_element_type=jnp.float32)               # (S, Dh)
        # Normalize AFTER the PV matmul: (S, Dh) pass instead of (S, S).
        oh = oh * pl.reciprocal(denom, approx=True)
        proj = proj + jnp.dot(oh.astype(jnp.bfloat16),
                              wo_ref[h * Dh:(h + 1) * Dh, :],
                              preferred_element_type=jnp.float32)
    y = x + proj + bo_ref[...]                                         # residual
    mu = jnp.mean(y, axis=-1, keepdims=True)
    var = jnp.mean((y - mu) ** 2, axis=-1, keepdims=True)
    y = (y - mu) * jax.lax.rsqrt(var + eps) * ln1g_ref[...] + ln1b_ref[...]

    # --- FFN block -------------------------------------------------------------
    h1 = jnp.dot(y.astype(jnp.bfloat16), w1_ref[...],
                 preferred_element_type=jnp.float32) + b1_ref[...]
    h1 = jnp.maximum(h1, 0.0)
    ff = jnp.dot(h1.astype(jnp.bfloat16), w2_ref[...],
                 preferred_element_type=jnp.float32) + b2_ref[...]
    z = y + ff                                                         # residual
    mu = jnp.mean(z, axis=-1, keepdims=True)
    var = jnp.mean((z - mu) ** 2, axis=-1, keepdims=True)
    o_ref[...] = ((z - mu) * jax.lax.rsqrt(var + eps) * ln2g_ref[...]
                  + ln2b_ref[...]).astype(o_ref.dtype)                 # bf16 out


def _expr_decoder_kernel(x_ref, w1_ref, b1_ref, w2_ref, b2_ref, w3_ref, b3_ref,
                         o_ref):
    x = x_ref[...]                                                     # bf16
    h = jnp.dot(x, w1_ref[...],
                preferred_element_type=jnp.float32) + b1_ref[...]
    h = jnp.where(h >= 0.0, h, 0.01 * h)                               # LeakyReLU
    h = jnp.dot(h.astype(jnp.bfloat16), w2_ref[...],
                preferred_element_type=jnp.float32) + b2_ref[...]
    h = jnp.where(h >= 0.0, h, 0.01 * h)
    # Final projection: (1, D) x (tm, D)^T -> lane-dense (1, tm) row; no
    # 128-wide lane padding, writeback is tm f32 values instead of tm*128.
    pred = jax.lax.dot_general(w3_ref[...], h.astype(jnp.bfloat16),
                               (((1,), (1,)), ((), ())),
                               preferred_element_type=jnp.float32)
    o_ref[...] = pred + b3_ref[...]


def _cls_decoder_kernel(*refs, n_hidden, eps):
    x_ref = refs[0]
    o_ref = refs[-1]
    params = refs[1:-1]
    x = x_ref[...]
    i = 0
    for _ in range(n_hidden):
        w, b, g, be = params[i:i + 4]
        i += 4
        h = jnp.dot(x.astype(jnp.bfloat16), w[...],
                    preferred_element_type=jnp.float32) + b[...]
        h = jnp.maximum(h, 0.0)                                        # ReLU
        mu = jnp.mean(h, axis=-1, keepdims=True)
        var = jnp.mean((h - mu) ** 2, axis=-1, keepdims=True)
        x = (h - mu) * jax.lax.rsqrt(var + eps) * g[...] + be[...]
    wo, bo = params[i], params[i + 1]
    o_ref[...] = (jnp.dot(x.astype(jnp.bfloat16), wo[...],
                          preferred_element_type=jnp.float32)
                  + bo[...]).astype(o_ref.dtype)


# ----------------------------------------------------------------------------
# pallas_call wrappers
# ----------------------------------------------------------------------------
def pallas_embed_stage(gene_rows, values_col, pert_rows, p, *,
                       max_value=512.0, ln_eps=1e-5, bn_eps=6.1e-5):
    M, D = gene_rows.shape
    tm, Mp = _row_tiling(M)
    gene_rows = _pad_rows(gene_rows, Mp)
    values_col = _pad_rows(values_col, Mp)
    pert_rows = _pad_rows(pert_rows, Mp)
    row = lambda i: (i, 0)
    rep = lambda i: (0, 0)
    out = pl.pallas_call(
        functools.partial(_embed_stage_kernel, max_value=max_value,
                          ln_eps=ln_eps, bn_eps=bn_eps),
        grid=(Mp // tm,),
        in_specs=[
            pl.BlockSpec((tm, D), row),            # gathered gene rows
            pl.BlockSpec((tm, 1), row),            # values column
            pl.BlockSpec((tm, D), row),            # gathered pert rows
            pl.BlockSpec((1, D), rep),             # enc LN gamma
            pl.BlockSpec((1, D), rep),             # enc LN beta
            pl.BlockSpec((1, D), rep),             # cve w1
            pl.BlockSpec((1, D), rep),             # cve b1
            pl.BlockSpec((D, D), rep),             # cve w2 (bf16)
            pl.BlockSpec((1, D), rep),             # cve b2
            pl.BlockSpec((1, D), rep),             # cve LN gamma
            pl.BlockSpec((1, D), rep),             # cve LN beta
            pl.BlockSpec((1, D), rep),             # bn gamma
            pl.BlockSpec((1, D), rep),             # bn beta
            pl.BlockSpec((1, D), rep),             # bn running mean
            pl.BlockSpec((1, D), rep),             # bn running var
        ],
        out_specs=pl.BlockSpec((tm, D), row),
        out_shape=jax.ShapeDtypeStruct((Mp, D), jnp.bfloat16),
        compiler_params=_compiler_params(1),
    )(gene_rows, values_col, pert_rows,
      p["enc_g"], p["enc_b"],
      p["cve"]["w1"], p["cve"]["b1"], p["cve"]["w2"], p["cve"]["b2"],
      p["cve"]["ln_g"], p["cve"]["ln_b"],
      p["bn_g"], p["bn_b"], p["bn_mean"], p["bn_var"])
    return out[:M] if Mp != M else out


def pallas_encoder_layer(x_bsd, bias, lp, *, nhead, eps=1e-5):
    """One fused post-norm encoder layer (attention + FFN) per batch row."""
    B, S, D = x_bsd.shape
    H = lp["ff_w1"].shape[1]
    scale = 1.0 / math.sqrt(D // nhead)
    rep = lambda b: (0, 0)
    return pl.pallas_call(
        functools.partial(_encoder_layer_kernel, nhead=nhead, scale=scale,
                          eps=eps),
        grid=(B,),
        in_specs=[
            pl.BlockSpec((None, S, D), lambda b: (b, 0, 0)),   # x (one batch)
            pl.BlockSpec((None, 1, S), lambda b: (b, 0, 0)),   # key-pad bias
            pl.BlockSpec((D, 3 * D), rep),                     # Wqkv (bf16)
            pl.BlockSpec((1, 3 * D), rep),                     # bqkv
            pl.BlockSpec((D, D), rep),                         # Wout (bf16)
            pl.BlockSpec((1, D), rep),                         # bout
            pl.BlockSpec((1, D), rep),                         # ln1 gamma
            pl.BlockSpec((1, D), rep),                         # ln1 beta
            pl.BlockSpec((D, H), rep),                         # ff_w1 (bf16)
            pl.BlockSpec((1, H), rep),                         # ff_b1
            pl.BlockSpec((H, D), rep),                         # ff_w2 (bf16)
            pl.BlockSpec((1, D), rep),                         # ff_b2
            pl.BlockSpec((1, D), rep),                         # ln2 gamma
            pl.BlockSpec((1, D), rep),                         # ln2 beta
        ],
        out_specs=pl.BlockSpec((None, S, D), lambda b: (b, 0, 0)),
        out_shape=jax.ShapeDtypeStruct((B, S, D), jnp.bfloat16),
        compiler_params=_compiler_params(1),
    )(x_bsd, bias, lp["in_w"], lp["in_b"], lp["out_w"], lp["out_b"],
      lp["ln1_g"], lp["ln1_b"], lp["ff_w1"], lp["ff_b1"], lp["ff_w2"],
      lp["ff_b2"], lp["ln2_g"], lp["ln2_b"])


def pallas_expr_decoder(x, ep):
    M, D = x.shape
    tm, Mp = _row_tiling(M)
    xp = _pad_rows(x, Mp)
    rep = lambda i: (0, 0)
    out = pl.pallas_call(
        _expr_decoder_kernel,
        grid=(Mp // tm,),
        in_specs=[
            pl.BlockSpec((tm, D), lambda i: (i, 0)),
            pl.BlockSpec((D, D), rep),
            pl.BlockSpec((1, D), rep),
            pl.BlockSpec((D, D), rep),
            pl.BlockSpec((1, D), rep),
            pl.BlockSpec((1, D), rep),             # w3 as a (1, D) row (bf16)
            pl.BlockSpec((1, 1), rep),             # b3 scalar
        ],
        out_specs=pl.BlockSpec((1, tm), lambda i: (0, i)),
        out_shape=jax.ShapeDtypeStruct((1, Mp), jnp.float32),
        compiler_params=_compiler_params(1),
    )(xp, ep["w1"], ep["b1"], ep["w2"], ep["b2"], ep["w3r"], ep["b3"])
    return out[0, :M]


def pallas_cls_decoder(cell_emb, cp, *, eps=1e-5):
    B, D = cell_emb.shape
    n_hidden = len(cp["layers"])
    Np = cp["out_wp"].shape[1]
    rep = lambda i: (0, 0)
    args = [cell_emb]
    in_specs = [pl.BlockSpec((B, D), rep)]
    for lyr in cp["layers"]:
        args += [lyr["w"], lyr["b"], lyr["g"], lyr["beta"]]
        in_specs += [pl.BlockSpec((D, D), rep), pl.BlockSpec((1, D), rep),
                     pl.BlockSpec((1, D), rep), pl.BlockSpec((1, D), rep)]
    args += [cp["out_wp"], cp["out_bp"]]
    in_specs += [pl.BlockSpec((D, Np), rep), pl.BlockSpec((1, Np), rep)]
    out = pl.pallas_call(
        functools.partial(_cls_decoder_kernel, n_hidden=n_hidden, eps=eps),
        grid=(1,),
        in_specs=in_specs,
        out_specs=pl.BlockSpec((B, Np), rep),
        out_shape=jax.ShapeDtypeStruct((B, Np), jnp.float32),
        compiler_params=_compiler_params(1),
    )(*args)
    return out[:, :cp["n_cls"]]


# ----------------------------------------------------------------------------
# Parameter init (kernel-ready layout: biases/LN as (1, D), matmul weights bf16)
# ----------------------------------------------------------------------------
def _uniform(key, shape, bound):
    return jax.random.uniform(key, shape, jnp.float32, -bound, bound)


def _init_linear(key, fan_in, fan_out):
    k1, k2 = jax.random.split(key)
    bound = 1.0 / math.sqrt(fan_in)
    w = _uniform(k1, (fan_in, fan_out), bound)
    b = _uniform(k2, (1, fan_out), bound)
    return w.astype(jnp.bfloat16), b


def init_params(key, *, ntoken, d_model, nhead, d_hid, nlayers,
                nlayers_cls, n_cls, pad_token_id, pert_pad_id):
    D = d_model
    keys = iter(jax.random.split(key, 64))
    ones = lambda n: jnp.ones((1, n), jnp.float32)
    zeros = lambda n: jnp.zeros((1, n), jnp.float32)
    params = {}

    # GeneEncoder (init_weights: uniform(-0.1, 0.1); padding row zeroed)
    emb = _uniform(next(keys), (ntoken, D), 0.1)
    params["gene_emb"] = emb.at[pad_token_id].set(0.0)
    params["enc_g"], params["enc_b"] = ones(D), zeros(D)

    # ContinuousValueEncoder
    bound1 = 1.0  # fan_in = 1
    k1, k2 = jax.random.split(next(keys))
    cw1 = _uniform(k1, (1, D), bound1)
    cb1 = _uniform(k2, (1, D), bound1)
    cw2, cb2 = _init_linear(next(keys), D, D)
    params["cve"] = dict(w1=cw1, b1=cb1, w2=cw2, b2=cb2,
                         ln_g=ones(D), ln_b=zeros(D))

    # pert_encoder: nn.Embedding(3, d_model, padding_idx=pert_pad_id)
    pe = jax.random.normal(next(keys), (3, D), jnp.float32)
    params["pert_emb"] = pe.at[pert_pad_id].set(0.0)

    # BatchNorm1d (eval-mode running statistics as real params)
    params["bn_g"], params["bn_b"] = ones(D), zeros(D)
    params["bn_mean"], params["bn_var"] = zeros(D), ones(D)

    # Transformer encoder layers (post-norm, ReLU FFN)
    layers = []
    for _ in range(nlayers):
        in_w, in_b = _init_linear(next(keys), D, 3 * D)
        out_w, out_b = _init_linear(next(keys), D, D)
        ff_w1, ff_b1 = _init_linear(next(keys), D, d_hid)
        ff_w2, ff_b2 = _init_linear(next(keys), d_hid, D)
        layers.append(dict(
            in_w=in_w, in_b=in_b, out_w=out_w, out_b=out_b,
            ff_w1=ff_w1, ff_b1=ff_b1, ff_w2=ff_w2, ff_b2=ff_b2,
            ln1_g=ones(D), ln1_b=zeros(D), ln2_g=ones(D), ln2_b=zeros(D)))
    params["layers"] = layers

    # ExprDecoder: Linear(D,D)+LeakyReLU, Linear(D,D)+LeakyReLU, Linear(D,1)
    ew1, eb1 = _init_linear(next(keys), D, D)
    ew2, eb2 = _init_linear(next(keys), D, D)
    ew3, eb3 = _init_linear(next(keys), D, 1)
    params["expr"] = dict(w1=ew1, b1=eb1, w2=ew2, b2=eb2,
                          w3r=jnp.transpose(ew3),       # (1, D) bf16 row
                          b3=eb3)                       # (1, 1) f32

    # ClsDecoder: (nlayers_cls-1) x [Linear, ReLU, LayerNorm] + Linear(d, n_cls)
    cls_layers = []
    for _ in range(nlayers_cls - 1):
        cw, cb = _init_linear(next(keys), D, D)
        cls_layers.append(dict(w=cw, b=cb, g=ones(D), beta=zeros(D)))
    ow, ob = _init_linear(next(keys), D, n_cls)
    Nc = _pad_lanes(n_cls)
    out_wp = jnp.zeros((D, Nc), jnp.bfloat16).at[:, :n_cls].set(ow)
    out_bp = jnp.zeros((1, Nc), jnp.float32).at[:, :n_cls].set(ob)
    params["cls"] = dict(layers=cls_layers, out_wp=out_wp, out_bp=out_bp,
                         n_cls=n_cls)
    return params


# ----------------------------------------------------------------------------
# Forward pass
# ----------------------------------------------------------------------------
def transformer_generator_forward(params, src, values, input_pert_flags,
                                  src_key_padding_mask, *, nhead, CLS=False):
    B, S = src.shape
    D = params["gene_emb"].shape[1]
    M = B * S

    # Embedding-table gathers stay in XLA (data-dependent row lookups).
    gene_rows = jnp.take(params["gene_emb"], src.reshape(-1), axis=0)
    pert_rows = jnp.take(params["pert_emb"], input_pert_flags.reshape(-1), axis=0)
    values_col = values.reshape(M, 1).astype(jnp.float32)

    # Fused embedding stage: GeneEncoder LN + CVE + pert add + BatchNorm1d.
    x = pallas_embed_stage(gene_rows, values_col, pert_rows, params)   # bf16
    x = x.reshape(B, S, D)

    # key-padding mask -> additive bias over keys (f32).
    bias = jnp.where(src_key_padding_mask, -1e9, 0.0).astype(jnp.float32)[:, None, :]

    # Post-norm TransformerEncoder: one fused kernel per layer (attn + FFN).
    for lp in params["layers"]:
        x = pallas_encoder_layer(x, bias, lp, nhead=nhead)

    transformer_output = x                                             # (B,S,D) bf16

    # ExprDecoder -> mlm_output (explicit_zero_prob=False path)
    pred = pallas_expr_decoder(x.reshape(M, D), params["expr"]).reshape(B, S)
    output = {"mlm_output": pred}

    if CLS:
        cell_emb = transformer_output[:, 0, :]          # cell_emb_style == 'cls'
        output["cls_output"] = pallas_cls_decoder(cell_emb, params["cls"])
    return output


# ----------------------------------------------------------------------------
if __name__ == "__main__":
    B, S = 2, 8
    ntoken, d_model, nhead, d_hid, nlayers = 50, 64, 4, 128, 2
    nlayers_cls, n_cls = 3, 5
    pad_token_id, pert_pad_id = 0, 2

    key = jax.random.PRNGKey(0)
    kp, k1, k2, k3 = jax.random.split(key, 4)

    params = init_params(kp, ntoken=ntoken, d_model=d_model, nhead=nhead,
                         d_hid=d_hid, nlayers=nlayers, nlayers_cls=nlayers_cls,
                         n_cls=n_cls, pad_token_id=pad_token_id,
                         pert_pad_id=pert_pad_id)

    src = jax.random.randint(k1, (B, S), 1, ntoken, dtype=jnp.int32)
    values = jax.random.uniform(k2, (B, S), jnp.float32, 0.0, 5.0)
    input_pert_flags = jax.random.randint(k3, (B, S), 0, 2, dtype=jnp.int32)
    src_key_padding_mask = jnp.zeros((B, S), dtype=bool).at[1, -2:].set(True)

    out = transformer_generator_forward(
        params, src, values, input_pert_flags, src_key_padding_mask,
        nhead=nhead, CLS=True)
    out = jax.block_until_ready(out)

    assert out["mlm_output"].shape == (B, S)
    assert out["cls_output"].shape == (B, n_cls)
    assert bool(jnp.all(jnp.isfinite(out["mlm_output"])))
    assert bool(jnp.all(jnp.isfinite(out["cls_output"])))
    print("KERNEL_OK")
</pallas_src>

<mosaic_0001>
module attributes {stable_mosaic.version = 11 : i64} {
  func.func @_embed_stage_kernel(%arg0: i32, %arg1: memref<16x64xf32, #tpu.memory_space<vmem>>, %arg2: memref<16x1xf32, #tpu.memory_space<vmem>>, %arg3: memref<16x64xf32, #tpu.memory_space<vmem>>, %arg4: memref<1x64xf32, #tpu.memory_space<vmem>>, %arg5: memref<1x64xf32, #tpu.memory_space<vmem>>, %arg6: memref<1x64xf32, #tpu.memory_space<vmem>>, %arg7: memref<1x64xf32, #tpu.memory_space<vmem>>, %arg8: memref<64x64xbf16, #tpu.memory_space<vmem>>, %arg9: memref<1x64xf32, #tpu.memory_space<vmem>>, %arg10: memref<1x64xf32, #tpu.memory_space<vmem>>, %arg11: memref<1x64xf32, #tpu.memory_space<vmem>>, %arg12: memref<1x64xf32, #tpu.memory_space<vmem>>, %arg13: memref<1x64xf32, #tpu.memory_space<vmem>>, %arg14: memref<1x64xf32, #tpu.memory_space<vmem>>, %arg15: memref<1x64xf32, #tpu.memory_space<vmem>>, %arg16: memref<16x64xbf16, #tpu.memory_space<vmem>>) attributes {dimension_semantics = [#tpu.dimension_semantics<parallel>], iteration_bounds = array<i64: 1>, scalar_prefetch = 0 : i64, scratch_operands = 0 : i64, tpu.core_type = #tpu.core_type<tc>, window_params = [{transform_indices = @transform_0, window_bounds = array<i64: 16, 64>}, {transform_indices = @transform_1, window_bounds = array<i64: 16, 1>}, {transform_indices = @transform_2, window_bounds = array<i64: 16, 64>}, {pipeline_mode = #tpu.pipeline_mode<synchronous>, transform_indices = @transform_3, window_bounds = array<i64: 1, 64>}, {pipeline_mode = #tpu.pipeline_mode<synchronous>, transform_indices = @transform_4, window_bounds = array<i64: 1, 64>}, {pipeline_mode = #tpu.pipeline_mode<synchronous>, transform_indices = @transform_5, window_bounds = array<i64: 1, 64>}, {pipeline_mode = #tpu.pipeline_mode<synchronous>, transform_indices = @transform_6, window_bounds = array<i64: 1, 64>}, {pipeline_mode = #tpu.pipeline_mode<synchronous>, transform_indices = @transform_7, window_bounds = array<i64: 64, 64>}, {pipeline_mode = #tpu.pipeline_mode<synchronous>, transform_indices = @transform_8, window_bounds = array<i64: 1, 64>}, {pipeline_mode = #tpu.pipeline_mode<synchronous>, transform_indices = @transform_9, window_bounds = array<i64: 1, 64>}, {pipeline_mode = #tpu.pipeline_mode<synchronous>, transform_indices = @transform_10, window_bounds = array<i64: 1, 64>}, {pipeline_mode = #tpu.pipeline_mode<synchronous>, transform_indices = @transform_11, window_bounds = array<i64: 1, 64>}, {pipeline_mode = #tpu.pipeline_mode<synchronous>, transform_indices = @transform_12, window_bounds = array<i64: 1, 64>}, {pipeline_mode = #tpu.pipeline_mode<synchronous>, transform_indices = @transform_13, window_bounds = array<i64: 1, 64>}, {pipeline_mode = #tpu.pipeline_mode<synchronous>, transform_indices = @transform_14, window_bounds = array<i64: 1, 64>}, {transform_indices = @transform_15, window_bounds = array<i64: 16, 64>}]} {
    %c0 = arith.constant 0 : index
    %c0_0 = arith.constant 0 : index
    %0 = vector.load %arg1[%c0, %c0_0] : memref<16x64xf32, #tpu.memory_space<vmem>>, vector<16x64xf32>
    %cst = arith.constant dense<0.000000e+00> : vector<16xf32>
    %1 = vector.multi_reduction <add>, %0, %cst [1] : vector<16x64xf32> to vector<16xf32>
    %2 = vector.shape_cast %1 : vector<16xf32> to vector<16x1xf32>
    %cst_1 = arith.constant 6.400000e+01 : f32
    %3 = vector.broadcast %cst_1 : f32 to vector<16x1xf32>
    %4 = arith.divf %2, %3 : vector<16x1xf32>
    %5 = vector.broadcast %4 : vector<16x1xf32> to vector<16x64xf32>
    %6 = arith.subf %0, %5 : vector<16x64xf32>
    %7 = arith.mulf %6, %6 : vector<16x64xf32>
    %cst_2 = arith.constant dense<0.000000e+00> : vector<16xf32>
    %8 = vector.multi_reduction <add>, %7, %cst_2 [1] : vector<16x64xf32> to vector<16xf32>
    %9 = vector.shape_cast %8 : vector<16xf32> to vector<16x1xf32>
    %cst_3 = arith.constant 6.400000e+01 : f32
    %10 = vector.broadcast %cst_3 : f32 to vector<16x1xf32>
    %11 = arith.divf %9, %10 : vector<16x1xf32>
    %12 = vector.broadcast %4 : vector<16x1xf32> to vector<16x64xf32>
    %13 = arith.subf %0, %12 : vector<16x64xf32>
    %cst_4 = arith.constant 9.99999974E-6 : f32
    %14 = vector.broadcast %cst_4 : f32 to vector<16x1xf32>
    %15 = arith.addf %11, %14 : vector<16x1xf32>
    %16 = math.rsqrt %15 : vector<16x1xf32>
    %17 = vector.broadcast %16 : vector<16x1xf32> to vector<16x64xf32>
    %18 = arith.mulf %13, %17 : vector<16x64xf32>
    %c0_5 = arith.constant 0 : index
    %c0_6 = arith.constant 0 : index
    %19 = vector.load %arg4[%c0_5, %c0_6] : memref<1x64xf32, #tpu.memory_space<vmem>>, vector<1x64xf32>
    %20 = vector.broadcast %19 : vector<1x64xf32> to vector<16x64xf32>
    %21 = arith.mulf %18, %20 : vector<16x64xf32>
    %c0_7 = arith.constant 0 : index
    %c0_8 = arith.constant 0 : index
    %22 = vector.load %arg5[%c0_7, %c0_8] : memref<1x64xf32, #tpu.memory_space<vmem>>, vector<1x64xf32>
    %23 = vector.broadcast %22 : vector<1x64xf32> to vector<16x64xf32>
    %24 = arith.addf %21, %23 : vector<16x64xf32>
    %c0_9 = arith.constant 0 : index
    %c0_10 = arith.constant 0 : index
    %25 = vector.load %arg2[%c0_9, %c0_10] : memref<16x1xf32, #tpu.memory_space<vmem>>, vector<16x1xf32>
    %cst_11 = arith.constant 5.120000e+02 : f32
    %26 = vector.broadcast %cst_11 : f32 to vector<16x1xf32>
    %27 = arith.minimumf %25, %26 : vector<16x1xf32>
    %c0_12 = arith.constant 0 : index
    %c0_13 = arith.constant 0 : index
    %28 = vector.load %arg6[%c0_12, %c0_13] : memref<1x64xf32, #tpu.memory_space<vmem>>, vector<1x64xf32>
    %29 = vector.broadcast %27 : vector<16x1xf32> to vector<16x64xf32>
    %30 = vector.broadcast %28 : vector<1x64xf32> to vector<16x64xf32>
    %31 = arith.mulf %29, %30 : vector<16x64xf32>
    %c0_14 = arith.constant 0 : index
    %c0_15 = arith.constant 0 : index
    %32 = vector.load %arg7[%c0_14, %c0_15] : memref<1x64xf32, #tpu.memory_space<vmem>>, vector<1x64xf32>
    %33 = vector.broadcast %32 : vector<1x64xf32> to vector<16x64xf32>
    %34 = arith.addf %31, %33 : vector<16x64xf32>
    %cst_16 = arith.constant 0.000000e+00 : f32
    %35 = vector.broadcast %cst_16 : f32 to vector<16x64xf32>
    %36 = arith.maximumf %34, %35 : vector<16x64xf32>
    %37 = arith.truncf %36 : vector<16x64xf32> to vector<16x64xbf16>
    %c0_17 = arith.constant 0 : index
    %c0_18 = arith.constant 0 : index
    %38 = vector.load %arg8[%c0_17, %c0_18] : memref<64x64xbf16, #tpu.memory_space<vmem>>, vector<64x64xbf16>
    %cst_19 = arith.constant dense<0.000000e+00> : vector<16x64xf32>
    %39 = tpu.matmul %37, %38, %cst_19 {dimension_numbers = #tpu.dot_dimension_numbers<[1], [0], [0], [1], [0, 0, 1, 1], [], []>} : vector<16x64xbf16>, vector<64x64xbf16>, vector<16x64xf32> -> vector<16x64xf32>
    %c0_20 = arith.constant 0 : index
    %c0_21 = arith.constant 0 : index
    %40 = vector.load %arg9[%c0_20, %c0_21] : memref<1x64xf32, #tpu.memory_space<vmem>>, vector<1x64xf32>
    %41 = vector.broadcast %40 : vector<1x64xf32> to vector<16x64xf32>
    %42 = arith.addf %39, %41 : vector<16x64xf32>
    %cst_22 = arith.constant dense<0.000000e+00> : vector<16xf32>
    %43 = vector.multi_reduction <add>, %42, %cst_22 [1] : vector<16x64xf32> to vector<16xf32>
    %44 = vector.shape_cast %43 : vector<16xf32> to vector<16x1xf32>
    %cst_23 = arith.constant 6.400000e+01 : f32
    %45 = vector.broadcast %cst_23 : f32 to vector<16x1xf32>
    %46 = arith.divf %44, %45 : vector<16x1xf32>
    %47 = vector.broadcast %46 : vector<16x1xf32> to vector<16x64xf32>
    %48 = arith.subf %42, %47 : vector<16x64xf32>
    %49 = arith.mulf %48, %48 : vector<16x64xf32>
    %cst_24 = arith.constant dense<0.000000e+00> : vector<16xf32>
    %50 = vector.multi_reduction <add>, %49, %cst_24 [1] : vector<16x64xf32> to vector<16xf32>
    %51 = vector.shape_cast %50 : vector<16xf32> to vector<16x1xf32>
    %cst_25 = arith.constant 6.400000e+01 : f32
    %52 = vector.broadcast %cst_25 : f32 to vector<16x1xf32>
    %53 = arith.divf %51, %52 : vector<16x1xf32>
    %54 = vector.broadcast %46 : vector<16x1xf32> to vector<16x64xf32>
    %55 = arith.subf %42, %54 : vector<16x64xf32>
    %cst_26 = arith.constant 9.99999974E-6 : f32
    %56 = vector.broadcast %cst_26 : f32 to vector<16x1xf32>
    %57 = arith.addf %53, %56 : vector<16x1xf32>
    %58 = math.rsqrt %57 : vector<16x1xf32>
    %59 = vector.broadcast %58 : vector<16x1xf32> to vector<16x64xf32>
    %60 = arith.mulf %55, %59 : vector<16x64xf32>
    %c0_27 = arith.constant 0 : index
    %c0_28 = arith.constant 0 : index
    %61 = vector.load %arg10[%c0_27, %c0_28] : memref<1x64xf32, #tpu.memory_space<vmem>>, vector<1x64xf32>
    %62 = vector.broadcast %61 : vector<1x64xf32> to vector<16x64xf32>
    %63 = arith.mulf %60, %62 : vector<16x64xf32>
    %c0_29 = arith.constant 0 : index
    %c0_30 = arith.constant 0 : index
    %64 = vector.load %arg11[%c0_29, %c0_30] : memref<1x64xf32, #tpu.memory_space<vmem>>, vector<1x64xf32>
    %65 = vector.broadcast %64 : vector<1x64xf32> to vector<16x64xf32>
    %66 = arith.addf %63, %65 : vector<16x64xf32>
    %67 = arith.addf %24, %66 : vector<16x64xf32>
    %c0_31 = arith.constant 0 : index
    %c0_32 = arith.constant 0 : index
    %68 = vector.load %arg3[%c0_31, %c0_32] : memref<16x64xf32, #tpu.memory_space<vmem>>, vector<16x64xf32>
    %69 = arith.addf %67, %68 : vector<16x64xf32>
    %c0_33 = arith.constant 0 : index
    %c0_34 = arith.constant 0 : index
    %70 = vector.load %arg15[%c0_33, %c0_34] : memref<1x64xf32, #tpu.memory_space<vmem>>, vector<1x64xf32>
    %cst_35 = arith.constant 6.100000e-05 : f32
    %71 = vector.broadcast %cst_35 : f32 to vector<1x64xf32>
    %72 = arith.addf %70, %71 : vector<1x64xf32>
    %73 = math.rsqrt %72 : vector<1x64xf32>
    %c0_36 = arith.constant 0 : index
    %c0_37 = arith.constant 0 : index
    %74 = vector.load %arg14[%c0_36, %c0_37] : memref<1x64xf32, #tpu.memory_space<vmem>>, vector<1x64xf32>
    %75 = vector.broadcast %74 : vector<1x64xf32> to vector<16x64xf32>
    %76 = arith.subf %69, %75 : vector<16x64xf32>
    %77 = vector.broadcast %73 : vector<1x64xf32> to vector<16x64xf32>
    %78 = arith.mulf %76, %77 : vector<16x64xf32>
    %c0_38 = arith.constant 0 : index
    %c0_39 = arith.constant 0 : index
    %79 = vector.load %arg12[%c0_38, %c0_39] : memref<1x64xf32, #tpu.memory_space<vmem>>, vector<1x64xf32>
    %80 = vector.broadcast %79 : vector<1x64xf32> to vector<16x64xf32>
    %81 = arith.mulf %78, %80 : vector<16x64xf32>
    %c0_40 = arith.constant 0 : index
    %c0_41 = arith.constant 0 : index
    %82 = vector.load %arg13[%c0_40, %c0_41] : memref<1x64xf32, #tpu.memory_space<vmem>>, vector<1x64xf32>
    %83 = vector.broadcast %82 : vector<1x64xf32> to vector<16x64xf32>
    %84 = arith.addf %81, %83 : vector<16x64xf32>
    %85 = arith.truncf %84 : vector<16x64xf32> to vector<16x64xbf16>
    %c0_42 = arith.constant 0 : index
    %c0_43 = arith.constant 0 : index
    %86 = vector.load %arg16[%c0_42, %c0_43] : memref<16x64xbf16, #tpu.memory_space<vmem>>, vector<16x64xbf16>
    tpu.vector_store %arg16[%c0_42, %c0_43], %85 {strides = array<i32>} : memref<16x64xbf16, #tpu.memory_space<vmem>>, vector<16x64xbf16>,
    return
  }
  func.func @transform_0(%arg0: i32) -> (i32, i32) {
    %c0_i32 = arith.constant 0 : i32
    %c0_i32_0 = arith.constant 0 : i32
    return %arg0, %c0_i32 : i32, i32
  }
  func.func @transform_1(%arg0: i32) -> (i32, i32) {
    %c0_i32 = arith.constant 0 : i32
    %c0_i32_0 = arith.constant 0 : i32
    return %arg0, %c0_i32 : i32, i32
  }
  func.func @transform_2(%arg0: i32) -> (i32, i32) {
    %c0_i32 = arith.constant 0 : i32
    %c0_i32_0 = arith.constant 0 : i32
    return %arg0, %c0_i32 : i32, i32
  }
  func.func @transform_3(%arg0: i32) -> (i32, i32) {
    %c0_i32 = arith.constant 0 : i32
    %c0_i32_0 = arith.constant 0 : i32
    %c0_i32_1 = arith.constant 0 : i32
    return %c0_i32, %c0_i32_0 : i32, i32
  }
  func.func @transform_4(%arg0: i32) -> (i32, i32) {
    %c0_i32 = arith.constant 0 : i32
    %c0_i32_0 = arith.constant 0 : i32
    %c0_i32_1 = arith.constant 0 : i32
    return %c0_i32, %c0_i32_0 : i32, i32
  }
  func.func @transform_5(%arg0: i32) -> (i32, i32) {
    %c0_i32 = arith.constant 0 : i32
    %c0_i32_0 = arith.constant 0 : i32
    %c0_i32_1 = arith.constant 0 : i32
    return %c0_i32, %c0_i32_0 : i32, i32
  }
  func.func @transform_6(%arg0: i32) -> (i32, i32) {
    %c0_i32 = arith.constant 0 : i32
    %c0_i32_0 = arith.constant 0 : i32
    %c0_i32_1 = arith.constant 0 : i32
    return %c0_i32, %c0_i32_0 : i32, i32
  }
  func.func @transform_7(%arg0: i32) -> (i32, i32) {
    %c0_i32 = arith.constant 0 : i32
    %c0_i32_0 = arith.constant 0 : i32
    %c0_i32_1 = arith.constant 0 : i32
    return %c0_i32, %c0_i32_0 : i32, i32
  }
  func.func @transform_8(%arg0: i32) -> (i32, i32) {
    %c0_i32 = arith.constant 0 : i32
    %c0_i32_0 = arith.constant 0 : i32
    %c0_i32_1 = arith.constant 0 : i32
    return %c0_i32, %c0_i32_0 : i32, i32
  }
  func.func @transform_9(%arg0: i32) -> (i32, i32) {
    %c0_i32 = arith.constant 0 : i32
    %c0_i32_0 = arith.constant 0 : i32
    %c0_i32_1 = arith.constant 0 : i32
    return %c0_i32, %c0_i32_0 : i32, i32
  }
  func.func @transform_10(%arg0: i32) -> (i32, i32) {
    %c0_i32 = arith.constant 0 : i32
    %c0_i32_0 = arith.constant 0 : i32
    %c0_i32_1 = arith.constant 0 : i32
    return %c0_i32, %c0_i32_0 : i32, i32
  }
  func.func @transform_11(%arg0: i32) -> (i32, i32) {
    %c0_i32 = arith.constant 0 : i32
    %c0_i32_0 = arith.constant 0 : i32
    %c0_i32_1 = arith.constant 0 : i32
    return %c0_i32, %c0_i32_0 : i32, i32
  }
  func.func @transform_12(%arg0: i32) -> (i32, i32) {
    %c0_i32 = arith.constant 0 : i32
    %c0_i32_0 = arith.constant 0 : i32
    %c0_i32_1 = arith.constant 0 : i32
    return %c0_i32, %c0_i32_0 : i32, i32
  }
  func.func @transform_13(%arg0: i32) -> (i32, i32) {
    %c0_i32 = arith.constant 0 : i32
    %c0_i32_0 = arith.constant 0 : i32
    %c0_i32_1 = arith.constant 0 : i32
    return %c0_i32, %c0_i32_0 : i32, i32
  }
  func.func @transform_14(%arg0: i32) -> (i32, i32) {
    %c0_i32 = arith.constant 0 : i32
    %c0_i32_0 = arith.constant 0 : i32
    %c0_i32_1 = arith.constant 0 : i32
    return %c0_i32, %c0_i32_0 : i32, i32
  }
  func.func @transform_15(%arg0: i32) -> (i32, i32) {
    %c0_i32 = arith.constant 0 : i32
    %c0_i32_0 = arith.constant 0 : i32
    return %arg0, %c0_i32 : i32, i32
  }
}

</mosaic_0001>

<llo_original>
// kernel: tpu_custom_call.1
$region0: #{tpu_custom_call.1}
  #allocation0 [shape = 'u32[]', space=smem, size = 0x4, offset = 0x4, fixed_abs, tag = 'smem constant byte address 0x4 - core index']
  #allocation1 [shape = 'u32[72,128]{1,0:T(1,128)}', space=vmem, size = 0x9000, scoped, tag = 'internal scratch']
  %s0 = inlined_call_operand.vmem [shape: f32[16,64], index: 0, kind: input, shape index: {}]
  %s1 = inlined_call_operand.vmem [shape: f32[16,1], index: 1, kind: input, shape index: {}]
  %s2 = inlined_call_operand.hbm [shape: f32[16,64], index: 2, kind: input, shape index: {}]
  %s3 = inlined_call_operand.vmem [shape: f32[1,64], index: 3, kind: input, shape index: {}]
  %s4 = inlined_call_operand.vmem [shape: f32[1,64], index: 4, kind: input, shape index: {}]
  %s5 = inlined_call_operand.vmem [shape: f32[1,64], index: 5, kind: input, shape index: {}]
  %s6 = inlined_call_operand.vmem [shape: f32[1,64], index: 6, kind: input, shape index: {}]
  %s7 = inlined_call_operand.hbm [shape: bf16[64,64], index: 7, kind: input, shape index: {}]
  %s8 = inlined_call_operand.vmem [shape: f32[1,64], index: 8, kind: input, shape index: {}]
  %s9 = inlined_call_operand.vmem [shape: f32[1,64], index: 9, kind: input, shape index: {}]
  %s10 = inlined_call_operand.vmem [shape: f32[1,64], index: 10, kind: input, shape index: {}]
  %s11 = inlined_call_operand.vmem [shape: f32[1,64], index: 11, kind: input, shape index: {}]
  %s12 = inlined_call_operand.vmem [shape: f32[1,64], index: 12, kind: input, shape index: {}]
  %s13 = inlined_call_operand.vmem [shape: f32[1,64], index: 13, kind: input, shape index: {}]
  %s14 = inlined_call_operand.vmem [shape: f32[1,64], index: 14, kind: input, shape index: {}]
  %s15 = inlined_call_operand.hbm [shape: bf16[16,64], index: 15, kind: output, shape index: {}]
  %s16 = sld [smem:[#allocation0]]
  $region78: #{tpu_custom_call.1} parent=0
    _
  %s18 = ssub.s32 1, %s16
  %s19 = scalar_select 0, %s18, %s16
  $region1: #{tpu_custom_call.1} parent=0
    #allocation2 [shape = 'u8[8192]{0}', space=vmem, size = 0x2000, scoped, tag = 'input window, operand 2, single buffered']
    #allocation3 [shape = 's32[1]{0}', space=sflag, size = 0x4, scoped, tag = 'scoped memory for tpu_custom_call.1']
    #allocation4 [shape = 's32[1]{0}', space=sflag, size = 0x4, scoped, tag = 'scoped memory for tpu_custom_call.1']
    #allocation5 [shape = 'u8[16384]{0}', space=vmem, size = 0x4000, scoped, tag = 'input window, operand 7, single buffered']
    #allocation6 [shape = 's32[1]{0}', space=sflag, size = 0x4, scoped, tag = 'scoped memory for tpu_custom_call.1']
    #allocation7 [shape = 'u8[4096]{0}', space=vmem, size = 0x1000, scoped, tag = 'output window, operand 0, single buffered']
    %20 = vsyncpa [#allocation3], 0
    %21 = vsyncpa [#allocation6], 0
    %22 = vsyncpa [#allocation4], 0
    // Predicated region
    $region2: #{tpu_custom_call.1} parent=1 // pred_check
      _
    $region3: #{tpu_custom_call.1} parent=1 // pred_check_branch
      %24 = sbr.rel (0) target = $region5
    $region4: #{tpu_custom_call.1} parent=1 // pred_region
      _
    $region5: #{tpu_custom_call.1} parent=1 // pred_fallthru
      _
    // Predicated region
    $region6: #{tpu_custom_call.1} parent=1 // pred_check
      _
    $region7: #{tpu_custom_call.1} parent=1 // pred_check_branch
      %26 = sbr.rel (0) target = $region9
    $region8: #{tpu_custom_call.1} parent=1 // pred_region
      _
    $region9: #{tpu_custom_call.1} parent=1 // pred_fallthru
      _
    // Predicated region
    $region10: #{tpu_custom_call.1} parent=1 // pred_check
      _
    $region11: #{tpu_custom_call.1} parent=1 // pred_check_branch
      %28 = sbr.rel (0) target = $region13
    $region12: #{tpu_custom_call.1} parent=1 // pred_region
      %30 = vsyncadd [#allocation3], 0
      %s31 = sshll.u32 %s2, 4
      %s32 = int_to_ptr.hbm [resolvable:$true] %s31
      %s33 = sshll.u32 [#allocation2], 4
      %s34 = int_to_ptr.vmem [resolvable:$true] %s33
      %39 = dma.hbm_to_vmem [thread:$0]  %s32, 256, %s34, [#allocation3], 128, 128, 8
    $region13: #{tpu_custom_call.1} parent=1 // pred_fallthru
      _
    // Predicated region
    $region14: #{tpu_custom_call.1} parent=1 // pred_check
      _
    $region15: #{tpu_custom_call.1} parent=1 // pred_check_branch
      %41 = sbr.rel (0) target = $region17
    $region16: #{tpu_custom_call.1} parent=1 // pred_region
      _
    $region17: #{tpu_custom_call.1} parent=1 // pred_fallthru
      _
    // Predicated region
    $region18: #{tpu_custom_call.1} parent=1 // pred_check
      _
    $region19: #{tpu_custom_call.1} parent=1 // pred_check_branch
      %43 = sbr.rel (0) target = $region21
    $region20: #{tpu_custom_call.1} parent=1 // pred_region
      _
    $region21: #{tpu_custom_call.1} parent=1 // pred_fallthru
      _
    // Predicated region
    $region22: #{tpu_custom_call.1} parent=1 // pred_check
      _
    $region23: #{tpu_custom_call.1} parent=1 // pred_check_branch
      %45 = sbr.rel (0) target = $region25
    $region24: #{tpu_custom_call.1} parent=1 // pred_region
      _
    $region25: #{tpu_custom_call.1} parent=1 // pred_fallthru
      _
    // Predicated region
    $region26: #{tpu_custom_call.1} parent=1 // pred_check
      _
    $region27: #{tpu_custom_call.1} parent=1 // pred_check_branch
      %47 = sbr.rel (0) target = $region29
    $region28: #{tpu_custom_call.1} parent=1 // pred_region
      _
    $region29: #{tpu_custom_call.1} parent=1 // pred_fallthru
      _
    // Predicated region
    $region30: #{tpu_custom_call.1} parent=1 // pred_check
      _
    $region31: #{tpu_custom_call.1} parent=1 // pred_check_branch
      %49 = sbr.rel (0) target = $region33
    $region32: #{tpu_custom_call.1} parent=1 // pred_region
      %51 = vsyncadd [#allocation6], 0
      %s52 = sshll.u32 %s7, 4
      %s53 = int_to_ptr.hbm [resolvable:$true] %s52
      %s54 = sshll.u32 [#allocation5], 4
      %s55 = int_to_ptr.vmem [resolvable:$true] %s54
      %60 = dma.hbm_to_vmem [thread:$0]  %s53, 512, %s55, [#allocation6], 64, 64, 4
    $region33: #{tpu_custom_call.1} parent=1 // pred_fallthru
      _
    // Predicated region
    $region34: #{tpu_custom_call.1} parent=1 // pred_check
      _
    $region35: #{tpu_custom_call.1} parent=1 // pred_check_branch
      %62 = sbr.rel (0) target = $region37
    $region36: #{tpu_custom_call.1} parent=1 // pred_region
      _
    $region37: #{tpu_custom_call.1} parent=1 // pred_fallthru
      _
    // Predicated region
    $region38: #{tpu_custom_call.1} parent=1 // pred_check
      _
    $region39: #{tpu_custom_call.1} parent=1 // pred_check_branch
      %64 = sbr.rel (0) target = $region41
    $region40: #{tpu_custom_call.1} parent=1 // pred_region
      _
    $region41: #{tpu_custom_call.1} parent=1 // pred_fallthru
      _
    // Predicated region
    $region42: #{tpu_custom_call.1} parent=1 // pred_check
      _
    $region43: #{tpu_custom_call.1} parent=1 // pred_check_branch
      %66 = sbr.rel (0) target = $region45
    $region44: #{tpu_custom_call.1} parent=1 // pred_region
      _
    $region45: #{tpu_custom_call.1} parent=1 // pred_fallthru
      _
    // Predicated region
    $region46: #{tpu_custom_call.1} parent=1 // pred_check
      _
    $region47: #{tpu_custom_call.1} parent=1 // pred_check_branch
      %68 = sbr.rel (0) target = $region49
    $region48: #{tpu_custom_call.1} parent=1 // pred_region
      _
    $region49: #{tpu_custom_call.1} parent=1 // pred_fallthru
      _
    // Predicated region
    $region50: #{tpu_custom_call.1} parent=1 // pred_check
      _
    $region51: #{tpu_custom_call.1} parent=1 // pred_check_branch
      %70 = sbr.rel (0) target = $region53
    $region52: #{tpu_custom_call.1} parent=1 // pred_region
      _
    $region53: #{tpu_custom_call.1} parent=1 // pred_fallthru
      _
    // Predicated region
    $region54: #{tpu_custom_call.1} parent=1 // pred_check
      _
    $region55: #{tpu_custom_call.1} parent=1 // pred_check_branch
      %72 = sbr.rel (0) target = $region57
    $region56: #{tpu_custom_call.1} parent=1 // pred_region
      _
    $region57: #{tpu_custom_call.1} parent=1 // pred_fallthru
      _
    // Predicated region
    $region58: #{tpu_custom_call.1} parent=1 // pred_check
      _
    $region59: #{tpu_custom_call.1} parent=1 // pred_check_branch
      %74 = sbr.rel (0) target = $region61
    $region60: #{tpu_custom_call.1} parent=1 // pred_region
      _
    $region61: #{tpu_custom_call.1} parent=1 // pred_fallthru
      _
    // Predicated region
    $region62: #{tpu_custom_call.1} parent=1 // pred_check
      _
    $region63: #{tpu_custom_call.1} parent=1 // pred_check_branch
      %76 = sbr.rel (0) target = $region65
    $region64: #{tpu_custom_call.1} parent=1 // pred_region
      %78 = dma.done [#allocation3], 256
    $region65: #{tpu_custom_call.1} parent=1 // pred_fallthru
      _
    // Predicated region
    $region66: #{tpu_custom_call.1} parent=1 // pred_check
      _
    $region67: #{tpu_custom_call.1} parent=1 // pred_check_branch
      %80 = sbr.rel (0) target = $region69
    $region68: #{tpu_custom_call.1} parent=1 // pred_region
      %82 = dma.done [#allocation6], 512
    $region69: #{tpu_custom_call.1} parent=1 // pred_fallthru
      _
    %v84 = vld [vmem:[%s0] sm:$0xff]
    %v85 = vld [vmem:[%s0 + $0x8] sm:$0xff]
    %vm86 = vcmask 523264
    %v87 = vsel %vm86, %v84, 0.0
    %88 = vadd.xlane.f32.xlu0 %v87
    %v89 = vpop.xlane.xlu0 %88
    %v90 = vsel %vm86, %v85, 0.0
    %91 = vadd.xlane.f32.xlu0 %v90
    %v92 = vpop.xlane.xlu0 %91
    %v93 = vrcp.pop 64.0
    %v94 = vmul.f32 64.0, %v93
    %v95 = vsub.f32 1.0, %v94
    %v96 = vmul.f32 %v93, %v95
    %v97 = vadd.f32 %v93, %v96
    %vm98 = vweird.f32 %v93
    %v99 = vsel %vm98, %v93, %v97
    %v100 = vmul.f32 %v89, %v99
    %v101 = vmul.f32 %v92, %v99
    %v102 = vsub.f32 %v84, %v100
    %v103 = vsub.f32 %v85, %v101
    %v104 = vmul.f32 %v102, %v102
    %v105 = vmul.f32 %v103, %v103
    %v106 = vsel %vm86, %v104, 0.0
    %107 = vadd.xlane.f32.xlu0 %v106
    %v108 = vpop.xlane.xlu0 %107
    %v109 = vsel %vm86, %v105, 0.0
    %110 = vadd.xlane.f32.xlu0 %v109
    %v111 = vpop.xlane.xlu0 %110
    %v112 = vmul.f32 %v108, %v99
    %v113 = vmul.f32 %v111, %v99
    %v114 = vadd.f32 %v112, 1e-05
    %v115 = vadd.f32 %v113, 1e-05
    %v116 = vrsqrt.pop %v114
    %v117 = vmul.f32 %v116, %v114
    %v118 = vmul.f32 %v117, %v116
    %v119 = vmul.f32 0.5, %v118
    %v120 = vsub.f32 1.5, %v119
    %v121 = vmul.f32 %v116, %v120
    %vm122 = vweird.f32 %v114
    %vm123 = vweird.f32 %v116
    %vm124 = vmor %vm122, %vm123
    %v125 = vsel %vm124, %v116, %v121
    %v126 = vrsqrt.pop %v115
    %v127 = vmul.f32 %v126, %v115
    %v128 = vmul.f32 %v127, %v126
    %v129 = vmul.f32 0.5, %v128
    %v130 = vsub.f32 1.5, %v129
    %v131 = vmul.f32 %v126, %v130
    %vm132 = vweird.f32 %v115
    %vm133 = vweird.f32 %v126
    %vm134 = vmor %vm132, %vm133
    %v135 = vsel %vm134, %v126, %v131
    %v136 = vmul.f32 %v102, %v125
    %v137 = vmul.f32 %v103, %v135
    %v138 = vld [vmem:[%s3] sm:$0x1]
    %v140 = vperm.slane %v138, 0
    %v142 = vmul.f32 %v136, %v140
    %v143 = vmul.f32 %v137, %v140
    %v144 = vld [vmem:[%s4] sm:$0x1]
    %v146 = vperm.slane %v144, 0
    %v148 = vadd.f32 %v142, %v146
    %v149 = vadd.f32 %v143, %v146
    %v150 = vld [vmem:[%s1] sm:$0xff]
    %v151 = vld [vmem:[%s1 + $0x8] sm:$0xff]
    %v152 = vmin.f32 %v150, 512.0
    %v153 = vmin.f32 %v151, 512.0
    %v154 = vld [vmem:[%s5] sm:$0x1]
    %156 = vset.pattern.permute.xlu0 0
    %157 = vperm.xlu0 %156, %v152
    %v158 = vpop.permute.xlu0 %157
    %161 = vset.pattern.permute.xlu0 0
    %162 = vperm.xlu0 %161, %v153
    %v163 = vpop.permute.xlu0 %162
    %v166 = vperm.slane %v154, 0
    %v168 = vmul.f32 %v158, %v166
    %v169 = vmul.f32 %v163, %v166
    %v170 = vld [vmem:[%s6] sm:$0x1]
    %v172 = vperm.slane %v170, 0
    %v174 = vadd.f32 %v168, %v172
    %v175 = vadd.f32 %v169, %v172
    %v176 = vmax.f32 %v174, 0.0
    %v177 = vmax.f32 %v175, 0.0
    %v178 = vpack.c.bf16 %v177, %v176
    %v179 = vld [vmem:[#allocation5] sm:$0xf]
    %v180 = vld [vmem:[#allocation5 + $0x4] sm:$0xf]
    %v181 = vld [vmem:[#allocation5 + $0x8] sm:$0xf]
    %v182 = vld [vmem:[#allocation5 + $0xc] sm:$0xf]
    %v183 = vld [vmem:[#allocation5 + $0x10] sm:$0xf]
    %v184 = vld [vmem:[#allocation5 + $0x14] sm:$0xf]
    %v185 = vld [vmem:[#allocation5 + $0x18] sm:$0xf]
    %v186 = vld [vmem:[#allocation5 + $0x1c] sm:$0xf]
    %v187 = vld [vmem:[%s8] sm:$0x1]
    %v189 = vperm.slane %v187, 0
    %v199 = vunpack.c.l.b16 %v179
    %v200 = vunpack.c.l.b16 %v180
    %v201 = vunpack.c.l.b16 %v181
    %v202 = vunpack.c.l.b16 %v182
    %v203 = vunpack.c.l.b16 %v183
    %v204 = vunpack.c.l.b16 %v184
    %v205 = vunpack.c.l.b16 %v185
    %v206 = vunpack.c.l.b16 %v186
    %v207 = vpack.c.b16 %v200, %v199
    %v208 = vpack.c.b16 %v202, %v201
    %v209 = vpack.c.b16 %v204, %v203
    %v210 = vpack.c.b16 %v206, %v205
    %v216 = vsel %vm86, %v178, 0
    %218 = vmatpush.bf16.msra.mxu0 0
    %219 = vmatpush.bf16.msra.mxu0 0
    %220 = vmatpush.bf16.msra.mxu0 0
    %221 = vmatpush.bf16.msra.mxu0 0
    %222 = vmatpush.bf16.msra.mxu0 %v210
    %223 = vmatpush.bf16.msra.mxu0 %v209
    %224 = vmatpush.bf16.msra.mxu0 %v208
    %225 = vmatpush.bf16.msra.mxu0 %v207
    %226 = vmatmul.bf16.gmra.mxu0 %v216
    %v227 = vpop.f32.mrf.mxu0
    %v228 = vadd.f32 %v189, %v227
    %v229 = vpop.f32.mrf.mxu0
    %v230 = vadd.f32 %v189, %v229
    %231 = vdwg.mxu0
    %v232 = vsel %vm86, %v228, 0.0
    %233 = vadd.xlane.f32.xlu0 %v232
    %v234 = vpop.xlane.xlu0 %233
    %v235 = vsel %vm86, %v230, 0.0
    %236 = vadd.xlane.f32.xlu0 %v235
    %v237 = vpop.xlane.xlu0 %236
    %v238 = vmul.f32 %v234, %v99
    %v239 = vmul.f32 %v237, %v99
    %v240 = vsub.f32 %v228, %v238
    %v241 = vsub.f32 %v230, %v239
    %v242 = vmul.f32 %v240, %v240
    %v243 = vmul.f32 %v241, %v241
    %v244 = vsel %vm86, %v242, 0.0
    %245 = vadd.xlane.f32.xlu0 %v244
    %v246 = vpop.xlane.xlu0 %245
    %v247 = vsel %vm86, %v243, 0.0
    %248 = vadd.xlane.f32.xlu0 %v247
    %v249 = vpop.xlane.xlu0 %248
    %v250 = vmul.f32 %v246, %v99
    %v251 = vmul.f32 %v249, %v99
    %v252 = vadd.f32 %v250, 1e-05
    %v253 = vadd.f32 %v251, 1e-05
    %v254 = vrsqrt.pop %v252
    %v255 = vmul.f32 %v254, %v252
    %v256 = vmul.f32 %v255, %v254
    %v257 = vmul.f32 0.5, %v256
    %v258 = vsub.f32 1.5, %v257
    %v259 = vmul.f32 %v254, %v258
    %vm260 = vweird.f32 %v252
    %vm261 = vweird.f32 %v254
    %vm262 = vmor %vm260, %vm261
    %v263 = vsel %vm262, %v254, %v259
    %v264 = vrsqrt.pop %v253
    %v265 = vmul.f32 %v264, %v253
    %v266 = vmul.f32 %v265, %v264
    %v267 = vmul.f32 0.5, %v266
    %v268 = vsub.f32 1.5, %v267
    %v269 = vmul.f32 %v264, %v268
    %vm270 = vweird.f32 %v253
    %vm271 = vweird.f32 %v264
    %vm272 = vmor %vm270, %vm271
    %v273 = vsel %vm272, %v264, %v269
    %v274 = vmul.f32 %v240, %v263
    %v275 = vmul.f32 %v241, %v273
    %v276 = vld [vmem:[%s9] sm:$0x1]
    %v278 = vperm.slane %v276, 0
    %v280 = vmul.f32 %v274, %v278
    %v281 = vmul.f32 %v275, %v278
    %v282 = vld [vmem:[%s10] sm:$0x1]
    %v284 = vperm.slane %v282, 0
    %v286 = vadd.f32 %v280, %v284
    %v287 = vadd.f32 %v281, %v284
    %v288 = vadd.f32 %v148, %v286
    %v289 = vadd.f32 %v149, %v287
    %v290 = vld [vmem:[#allocation2] sm:$0xff]
    %v291 = vld [vmem:[#allocation2 + $0x8] sm:$0xff]
    %v292 = vadd.f32 %v288, %v290
    %v293 = vadd.f32 %v289, %v291
    %v294 = vld [vmem:[%s14] sm:$0x1]
    %v295 = vadd.f32 %v294, 6.1e-05
    %v296 = vrsqrt.pop %v295
    %v297 = vmul.f32 %v296, %v295
    %v298 = vmul.f32 %v297, %v296
    %v299 = vmul.f32 0.5, %v298
    %v300 = vsub.f32 1.5, %v299
    %v301 = vmul.f32 %v296, %v300
    %vm302 = vweird.f32 %v295
    %vm303 = vweird.f32 %v296
    %vm304 = vmor %vm302, %vm303
    %v305 = vsel %vm304, %v296, %v301
    %v306 = vld [vmem:[%s13] sm:$0x1]
    %v308 = vperm.slane %v306, 0
    %v310 = vsub.f32 %v292, %v308
    %v311 = vsub.f32 %v293, %v308
    %v313 = vperm.slane %v305, 0
    %v315 = vmul.f32 %v310, %v313
    %v316 = vmul.f32 %v311, %v313
    %v317 = vld [vmem:[%s11] sm:$0x1]
    %v319 = vperm.slane %v317, 0
    %v321 = vmul.f32 %v315, %v319
    %v322 = vmul.f32 %v316, %v319
    %v323 = vld [vmem:[%s12] sm:$0x1]
    %v325 = vperm.slane %v323, 0
    %v327 = vadd.f32 %v321, %v325
    %v328 = vadd.f32 %v322, %v325
    %v329 = vpack.c.bf16 %v327, %v327
    %v330 = vpack.c.bf16 %v328, %v328
    %vm331 = vcmask 519168
    %332 = vst.msk [vmem:[#allocation7] sm:$0xf] %vm331, %v329
    %333 = vst.msk [vmem:[#allocation7 + $0x4] sm:$0xf] %vm331, %v330
    // Predicated region
    $region70: #{tpu_custom_call.1} parent=1 // pred_check
      _
    $region71: #{tpu_custom_call.1} parent=1 // pred_check_branch
      %335 = sbr.rel (0) target = $region73
    $region72: #{tpu_custom_call.1} parent=1 // pred_region
      %337 = vsyncadd [#allocation4], 0
      %s338 = sshll.u32 [#allocation7], 4
      %s339 = int_to_ptr.vmem [resolvable:$true] %s338
      %s340 = sshll.u32 %s15, 4
      %s341 = int_to_ptr.hbm [resolvable:$true] %s340
      %346 = dma.vmem_to_hbm [thread:$0]  %s339, 128, %s341, [#allocation4], 64, 64, 4
    $region73: #{tpu_custom_call.1} parent=1 // pred_fallthru
      _
    // Predicated region
    $region74: #{tpu_custom_call.1} parent=1 // pred_check
      _
    $region75: #{tpu_custom_call.1} parent=1 // pred_check_branch
      %348 = sbr.rel (0) target = $region77
    $region76: #{tpu_custom_call.1} parent=1 // pred_region
      %350 = dma.done [#allocation4], 128
    $region77: #{tpu_custom_call.1} parent=1 // pred_fallthru
      _
    %351 = vsyncpa [#allocation3], 1
    %352 = vsyncpa [#allocation6], 1
    %353 = vsyncpa [#allocation4], 1

</llo_original>
